<compile_context>
chip_gen: v6e
topology: v6e:2x2x1
jax: 0.10.0
libtpu: 0.0.40
codegen_flags: <defaults>
</compile_context>

<pallas_src>
import jax
import jax.numpy as jnp
import numpy as np
from jax.experimental import pallas as pl
from jax.experimental.pallas import tpu as pltpu

_EPS = 1e-6                     # module uses LayerNorm(..., eps=1e-06) explicitly
_RATIO = 8                      # pixel-shuffle upscale factor
_GROUP_CH = (1, 3, 1, 3, 4)     # depth, feature, opacity, scaling, rotation
_OUT_CH = sum(_GROUP_CH)        # 12


def _round_up(v, m):
    return ((v + m - 1) // m) * m


def _final_layer_kernel(x_ref, w_ref, b_ref, o_ref):
    # LayerNorm stats in fp32 (matches the fp16-safe torch LayerNorm subclass).
    # NOTE: rows past the true token count in the padded tail block read
    # unspecified HBM and may compute NaN/Inf; rows are independent and those
    # output rows are dropped by Pallas.  Do NOT add any cross-row reduction to
    # this kernel without masking the tail rows first.
    x = x_ref[...].astype(jnp.float32)
    mu = jnp.mean(x, axis=-1, keepdims=True)
    xc = x - mu
    var = jnp.mean(xc * xc, axis=-1, keepdims=True)
    xn = xc * jax.lax.rsqrt(var + _EPS)
    # Fused 1x1 convs: gamma folded into W, beta folded into the bias row.
    # f32 accumulation on the MXU, single cast at the store (possibly bf16).
    acc = jnp.dot(xn.astype(w_ref.dtype), w_ref[...],
                  preferred_element_type=jnp.float32)
    o_ref[...] = (acc + b_ref[...]).astype(o_ref.dtype)


def gsorg_final_layer(x, T, gamma, beta, w_mat, *, tm=None,
                      compute_dtype=None, out_dtype=None,
                      return_token_major=False):
    """x: (B, T*L*L, C); gamma/beta: (C,); w_mat: (C, 768) = concatenated
    [depth(64) | feature(192) | opacity(64) | scaling(192) | rotation(256)]
    1x1-conv weights, transposed for x @ W.

    Returns (B, 12, T, 8L, 8L), matching GSORGFinalLayer.forward(x, T) with
    use_deconv=False and the LayerNorm branch.  With return_token_major=True
    returns the (B, T, L, L, 12, 8, 8) token-major layout instead (no final
    HBM transpose pass).
    """
    B, N, C = x.shape
    L = int(round((N // T) ** 0.5))
    OUT = w_mat.shape[1]
    r = _RATIO
    tokens = B * N

    compute_dtype = x.dtype if compute_dtype is None else compute_dtype
    out_dtype = x.dtype if out_dtype is None else out_dtype
    x_item = np.dtype(x.dtype).itemsize
    out_item = np.dtype(out_dtype).itemsize
    w_item = np.dtype(compute_dtype).itemsize

    # ---- tile size (tokens per grid step) -------------------------------
    # Big tiles amortize the ~0.35us/step overhead; keep >= ~8 grid steps so
    # both v7x TensorCores get >= 4 pipelined steps each under "parallel".
    if tm is None:
        tm = 4096 if out_item <= 2 else 2048
    tm = min(tm, _round_up(pl.cdiv(tokens, 8), 8))
    tm = max(8, min(tm, _round_up(tokens, 8)))
    grid = (pl.cdiv(tokens, tm),)   # non-divisible token counts -> padded tail block

    # ---- explicit scoped-VMEM budget from the real working set ----------
    w_bytes = C * OUT * w_item + OUT * 4
    est = (2 * tm * C * x_item        # double-buffered input tiles
           + 2 * tm * OUT * out_item  # double-buffered output tiles
           + tm * OUT * 4             # f32 matmul accumulator temporary
           + 4 * tm * C * 4           # f32 LN temporaries
           + w_bytes)
    vmem_limit = int(min(max(int(est * 1.5), 16 * 1024 * 1024),
                         56 * 1024 * 1024))   # stay under v7x 64 MiB physical

    # ---- advisory cost estimate (HBM-heavy custom call) ------------------
    cost = pl.CostEstimate(
        flops=int(2 * tokens * C * OUT + 8 * tokens * C),
        transcendentals=int(tokens),   # one rsqrt per token
        bytes_accessed=int(tokens * (C * x_item + OUT * out_item) + w_bytes),
    )

    # ---- fold the LN affine into the matmul (exact in infinite precision):
    #   (xn*gamma + beta) @ W == xn @ (gamma[:,None]*W) + beta @ W
    w32 = w_mat.astype(jnp.float32)
    w_fold = (gamma.astype(jnp.float32)[:, None] * w32).astype(compute_dtype)
    b_fold = (beta.astype(jnp.float32) @ w32).reshape(1, OUT)   # f32 bias row

    x_flat = x.reshape(tokens, C)

    y = pl.pallas_call(
        _final_layer_kernel,
        out_shape=jax.ShapeDtypeStruct((tokens, OUT), out_dtype),
        grid_spec=pltpu.PrefetchScalarGridSpec(
            num_scalar_prefetch=0,
            grid=grid,
            in_specs=[
                pl.BlockSpec((tm, C), lambda i: (i, 0)),
                pl.BlockSpec((C, OUT), lambda i: (0, 0)),   # resident weights
                pl.BlockSpec((1, OUT), lambda i: (0, 0)),   # resident bias row
            ],
            out_specs=pl.BlockSpec((tm, OUT), lambda i: (i, 0)),
        ),
        compiler_params=pltpu.CompilerParams(
            dimension_semantics=("parallel",),
            vmem_limit_bytes=vmem_limit,
        ),
        cost_estimate=cost,
    )(x_flat, w_fold, b_fold)

    # --- glue: PixelShuffle(8) + channel concat + '(B T) C H W -> B C T H W' ---
    # The 768 output columns are already ordered (out_channel, dh, dw), so the
    # 5x pixel-shuffle + concat is a single reshape (free) + transpose.
    y = y.reshape(B, T, L, L, _OUT_CH, r, r)
    if return_token_major:
        return y
    y = jnp.transpose(y, (0, 4, 1, 2, 5, 3, 6))      # (B, 12, T, L, r, L, r)
    return y.reshape(B, _OUT_CH, T, L * r, L * r)


def _reference(x, T, gamma, beta, w_mat):
    """Pure-JAX f32 reference mirroring the PyTorch forward (group-wise glue)."""
    B, N, C = x.shape
    L = int(round((N // T) ** 0.5))
    xf = x.astype(jnp.float32)
    mu = jnp.mean(xf, axis=-1, keepdims=True)
    var = jnp.mean((xf - mu) ** 2, axis=-1, keepdims=True)
    xn = (xf - mu) * jax.lax.rsqrt(var + _EPS) * gamma + beta
    y = jnp.einsum("bnc,co->bno", xn, w_mat.astype(jnp.float32))
    r = _RATIO
    y = y.reshape(B, T, L, L, -1)
    pieces = []
    off = 0
    for c in _GROUP_CH:
        g = y[..., off:off + c * r * r]
        off += c * r * r
        g = g.reshape(B, T, L, L, c, r, r)
        g = jnp.transpose(g, (0, 4, 1, 2, 5, 3, 6)).reshape(B, c, T, L * r, L * r)
        pieces.append(g)
    return jnp.concatenate(pieces, axis=1).astype(x.dtype)


if __name__ == "__main__":
    C = 32                                  # hid_channels
    OUT = _OUT_CH * _RATIO * _RATIO         # 12 * 64 = 768

    def make_inputs(key, B, T, L):
        N = T * L * L
        k_x, k_g, k_b, k_w = jax.random.split(key, 4)
        x = jax.random.normal(k_x, (B, N, C), dtype=jnp.float32)
        gamma = 1.0 + 0.1 * jax.random.normal(k_g, (C,), dtype=jnp.float32)
        beta = 0.1 * jax.random.normal(k_b, (C,), dtype=jnp.float32)
        # Concatenated 1x1-conv weights -> (OUT, C), transposed for x @ W.
        w_all = 0.05 * jax.random.normal(k_w, (OUT, C), dtype=jnp.float32)
        return x, gamma, beta, w_all.T

    # (1) production-like spatial size (8L = 128), f32 compute + f32 output.
    x, gamma, beta, w_mat = make_inputs(jax.random.PRNGKey(0), B=2, T=2, L=16)
    ref = _reference(x, 2, gamma, beta, w_mat)
    out = jax.block_until_ready(gsorg_final_layer(x, 2, gamma, beta, w_mat))
    assert out.shape == (2, 12, 2, 128, 128), out.shape
    assert jnp.allclose(out, ref, atol=1e-4, rtol=1e-4)

    # (2) perf path: bf16 matmul operands + bf16 output stream (f32 LN stats
    #     and f32 MXU accumulation, one cast at the store).
    out_bf16 = jax.block_until_ready(
        gsorg_final_layer(x, 2, gamma, beta, w_mat,
                          compute_dtype=jnp.bfloat16, out_dtype=jnp.bfloat16))
    assert out_bf16.dtype == jnp.bfloat16
    assert jnp.allclose(out_bf16.astype(jnp.float32), ref, atol=5e-2, rtol=5e-2)

    # (3) token-major output (no final HBM transpose pass for fused consumers).
    y_tok = jax.block_until_ready(
        gsorg_final_layer(x, 2, gamma, beta, w_mat, return_token_major=True))
    assert y_tok.shape == (2, 2, 16, 16, _OUT_CH, 8, 8), y_tok.shape

    # (4) odd token count (not a multiple of 8) -> padded tail block is benign.
    x2, g2, b2, w2 = make_inputs(jax.random.PRNGKey(1), B=1, T=3, L=5)
    ref2 = _reference(x2, 3, g2, b2, w2)
    out2 = jax.block_until_ready(gsorg_final_layer(x2, 3, g2, b2, w2))
    assert out2.shape == (1, 12, 3, 40, 40), out2.shape
    assert jnp.allclose(out2, ref2, atol=1e-4, rtol=1e-4)

    print("KERNEL_OK")
</pallas_src>

<mosaic_0001>
module attributes {stable_mosaic.version = 11 : i64} {
  func.func @_final_layer_kernel(%arg0: i32, %arg1: memref<128x32xf32, #tpu.memory_space<vmem>>, %arg2: memref<32x768xf32, #tpu.memory_space<vmem>>, %arg3: memref<1x768xf32, #tpu.memory_space<vmem>>, %arg4: memref<128x768xf32, #tpu.memory_space<vmem>>) attributes {dimension_semantics = [#tpu.dimension_semantics<parallel>], iteration_bounds = array<i64: 8>, scalar_prefetch = 0 : i64, scratch_operands = 0 : i64, tpu.core_type = #tpu.core_type<tc>, window_params = [{transform_indices = @transform_0, window_bounds = array<i64: 128, 32>}, {pipeline_mode = #tpu.pipeline_mode<synchronous>, transform_indices = @transform_1, window_bounds = array<i64: 32, 768>}, {pipeline_mode = #tpu.pipeline_mode<synchronous>, transform_indices = @transform_2, window_bounds = array<i64: 1, 768>}, {transform_indices = @transform_3, window_bounds = array<i64: 128, 768>}]} {
    %c0 = arith.constant 0 : index
    %c0_0 = arith.constant 0 : index
    %0 = vector.load %arg1[%c0, %c0_0] : memref<128x32xf32, #tpu.memory_space<vmem>>, vector<128x32xf32>
    %cst = arith.constant dense<0.000000e+00> : vector<128xf32>
    %1 = vector.multi_reduction <add>, %0, %cst [1] : vector<128x32xf32> to vector<128xf32>
    %2 = vector.shape_cast %1 : vector<128xf32> to vector<128x1xf32>
    %cst_1 = arith.constant 3.200000e+01 : f32
    %3 = vector.broadcast %cst_1 : f32 to vector<128x1xf32>
    %4 = arith.divf %2, %3 : vector<128x1xf32>
    %5 = vector.broadcast %4 : vector<128x1xf32> to vector<128x32xf32>
    %6 = arith.subf %0, %5 : vector<128x32xf32>
    %7 = arith.mulf %6, %6 : vector<128x32xf32>
    %cst_2 = arith.constant dense<0.000000e+00> : vector<128xf32>
    %8 = vector.multi_reduction <add>, %7, %cst_2 [1] : vector<128x32xf32> to vector<128xf32>
    %9 = vector.shape_cast %8 : vector<128xf32> to vector<128x1xf32>
    %cst_3 = arith.constant 3.200000e+01 : f32
    %10 = vector.broadcast %cst_3 : f32 to vector<128x1xf32>
    %11 = arith.divf %9, %10 : vector<128x1xf32>
    %cst_4 = arith.constant 9.99999997E-7 : f32
    %12 = vector.broadcast %cst_4 : f32 to vector<128x1xf32>
    %13 = arith.addf %11, %12 : vector<128x1xf32>
    %14 = math.rsqrt %13 : vector<128x1xf32>
    %15 = vector.broadcast %14 : vector<128x1xf32> to vector<128x32xf32>
    %16 = arith.mulf %6, %15 : vector<128x32xf32>
    %c0_5 = arith.constant 0 : index
    %c0_6 = arith.constant 0 : index
    %17 = vector.load %arg2[%c0_5, %c0_6] : memref<32x768xf32, #tpu.memory_space<vmem>>, vector<32x768xf32>
    %cst_7 = arith.constant dense<0.000000e+00> : vector<128x768xf32>
    %18 = tpu.matmul %16, %17, %cst_7 {dimension_numbers = #tpu.dot_dimension_numbers<[1], [0], [0], [1], [0, 0, 1, 1], [], []>} : vector<128x32xf32>, vector<32x768xf32>, vector<128x768xf32> -> vector<128x768xf32>
    %c0_8 = arith.constant 0 : index
    %c0_9 = arith.constant 0 : index
    %19 = vector.load %arg3[%c0_8, %c0_9] : memref<1x768xf32, #tpu.memory_space<vmem>>, vector<1x768xf32>
    %20 = vector.broadcast %19 : vector<1x768xf32> to vector<128x768xf32>
    %21 = arith.addf %18, %20 : vector<128x768xf32>
    %c0_10 = arith.constant 0 : index
    %c0_11 = arith.constant 0 : index
    %22 = vector.load %arg4[%c0_10, %c0_11] : memref<128x768xf32, #tpu.memory_space<vmem>>, vector<128x768xf32>
    tpu.vector_store %arg4[%c0_10, %c0_11], %21 {strides = array<i32>} : memref<128x768xf32, #tpu.memory_space<vmem>>, vector<128x768xf32>,
    return
  }
  func.func @transform_0(%arg0: i32) -> (i32, i32) {
    %c0_i32 = arith.constant 0 : i32
    %c0_i32_0 = arith.constant 0 : i32
    return %arg0, %c0_i32 : i32, i32
  }
  func.func @transform_1(%arg0: i32) -> (i32, i32) {
    %c0_i32 = arith.constant 0 : i32
    %c0_i32_0 = arith.constant 0 : i32
    %c0_i32_1 = arith.constant 0 : i32
    return %c0_i32, %c0_i32_0 : i32, i32
  }
  func.func @transform_2(%arg0: i32) -> (i32, i32) {
    %c0_i32 = arith.constant 0 : i32
    %c0_i32_0 = arith.constant 0 : i32
    %c0_i32_1 = arith.constant 0 : i32
    return %c0_i32, %c0_i32_0 : i32, i32
  }
  func.func @transform_3(%arg0: i32) -> (i32, i32) {
    %c0_i32 = arith.constant 0 : i32
    %c0_i32_0 = arith.constant 0 : i32
    return %arg0, %c0_i32 : i32, i32
  }
}

</mosaic_0001>

<llo_original>
// kernel: tpu_custom_call.1
$region0: #{tpu_custom_call.1}
  #allocation0 [shape = 'u32[]', space=smem, size = 0x4, offset = 0x4, fixed_abs, tag = 'smem constant byte address 0x4 - core index']
  #allocation1 [shape = 'u32[144,128]{1,0:T(1,128)}', space=vmem, size = 0x12000, scoped, tag = 'internal scratch']
  %s0 = inlined_call_operand.vmem [shape: f32[1024,32], index: 0, kind: input, shape index: {}]
  %s1 = inlined_call_operand.hbm [shape: f32[32,768], index: 1, kind: input, shape index: {}]
  %s2 = inlined_call_operand.hbm [shape: f32[1,768], index: 2, kind: input, shape index: {}]
  %s3 = inlined_call_operand.hbm [shape: f32[1024,768], index: 3, kind: output, shape index: {}]
  %s4 = sld [smem:[#allocation0]]
  $region53: #{tpu_custom_call.1} parent=0
    _
  %s6 = ssub.s32 1, %s4
  %s7 = scalar_select 0, %s6, %s4
  $region1: #{tpu_custom_call.1} parent=0
    #allocation2 [shape = 'u8[98304]{0}', space=vmem, size = 0x18000, scoped, tag = 'input window, operand 1, single buffered']
    #allocation3 [shape = 's32[2]{0}', space=sflag, size = 0x8, scoped, tag = 'scoped memory for tpu_custom_call.1']
    #allocation4 [shape = 's32[2]{0}', space=sflag, size = 0x8, scoped, tag = 'scoped memory for tpu_custom_call.1']
    #allocation5 [shape = 'u8[3072]{0}', space=vmem, size = 0xc00, scoped, tag = 'input window, operand 2, single buffered']
    #allocation6 [shape = 's32[1]{0}', space=sflag, size = 0x4, scoped, tag = 'scoped memory for tpu_custom_call.1']
    #allocation7 [shape = 'u8[786432]{0}', space=vmem, size = 0xc0000, scoped, tag = 'output window, operand 0']
    %8 = vsyncpa [#allocation3], 0
    %9 = vsyncpa [#allocation6], 0
    %10 = vsyncpa [#allocation4], 0
    %s11 = scalar_lea.sflag [#allocation4], 1
    %12 = vsyncpa %s11, 0
    loop: start=0, step=1, limit=10
    $region2: #{tpu_custom_call.1} parent=1 // loop_pre_header
      _
    $region3: #{tpu_custom_call.1} parent=1 // loop_header
      %s14 = sphi 0, %s18
      %p15 = scmp.ge.s32.totalorder %s14, 10
      %s24 = sphi 0, %s26
      %s27 = sphi 0, %s24
      %s28 = sphi 0, %s27
      %s44 = sphi 0, %s28
      %s48 = sphi 0, %s48
      %s50 = sphi 0, %s48
      %s51 = sphi 0, %s50
      %s65 = sphi 0, %s51
      %s69 = sphi 0, %s69
      %s71 = sphi 0, %s69
      %s72 = sphi 0, %s71
      %s86 = sphi 0, %s72
      %s92 = sphi 0, %s94
      %s95 = sphi 0, %s92
      %s96 = sphi 0, %s95
      %s112 = sphi 0, %s96
    $region4: #{tpu_custom_call.1} parent=1 // loop_header_branch
      %17 = sbr.rel (%p15) target = $region8
    $region5: #{tpu_custom_call.1} parent=1 // loop_body
      %s19 = ssub.s32 %s14, 1
      %s20 = ssub.s32 %s14, 2
      %s21 = sadd.s32 %s14, 1
      %s22 = ssub.s32 %s14, %s21
      %p23 = scmp.eq.s32.totalorder %s22, 0
      %s25 = sadd.s32 %s24, 1
      %s26 = scalar_select %p23, %s24, %s25
      %p29 = pneg %p23
      %p30 = scmp.eq.s32.totalorder %s14, 7
      %p31 = por %p29, %p30
      %p32 = scmp.ne.s32.totalorder %s24, %s27
      %p33 = scmp.eq.s32.totalorder %s14, 0
      %p34 = por %p32, %p33
      %p35 = scmp.ne.s32.totalorder %s24, %s27
      %p36 = scmp.eq.s32.totalorder %s19, 7
      %p37 = por %p35, %p36
      %p38 = scmp.ne.s32.totalorder %s27, %s28
      %p39 = scmp.eq.s32.totalorder %s19, 0
      %p40 = por %p38, %p39
      %p41 = scmp.ne.s32.totalorder %s27, %s28
      %p42 = scmp.eq.s32.totalorder %s20, 7
      %p43 = por %p41, %p42
      %p45 = scmp.ne.s32.totalorder %s28, %s44
      %p46 = scmp.eq.s32.totalorder %s20, 0
      %p47 = por %p45, %p46
      %s49 = sadd.s32 %s48, 1
      %p52 = scmp.eq.s32.totalorder %s14, 7
      %p53 = scmp.ne.s32.totalorder %s48, %s50
      %p54 = scmp.eq.s32.totalorder %s14, 0
      %p55 = por %p53, %p54
      %p56 = scmp.ne.s32.totalorder %s48, %s50
      %p57 = scmp.eq.s32.totalorder %s19, 7
      %p58 = por %p56, %p57
      %p59 = scmp.ne.s32.totalorder %s50, %s51
      %p60 = scmp.eq.s32.totalorder %s19, 0
      %p61 = por %p59, %p60
      %p62 = scmp.ne.s32.totalorder %s50, %s51
      %p63 = scmp.eq.s32.totalorder %s20, 7
      %p64 = por %p62, %p63
      %p66 = scmp.ne.s32.totalorder %s51, %s65
      %p67 = scmp.eq.s32.totalorder %s20, 0
      %p68 = por %p66, %p67
      %s70 = sadd.s32 %s69, 1
      %p73 = scmp.eq.s32.totalorder %s14, 7
      %p74 = scmp.ne.s32.totalorder %s69, %s71
      %p75 = scmp.eq.s32.totalorder %s14, 0
      %p76 = por %p74, %p75
      %p77 = scmp.ne.s32.totalorder %s69, %s71
      %p78 = scmp.eq.s32.totalorder %s19, 7
      %p79 = por %p77, %p78
      %p80 = scmp.ne.s32.totalorder %s71, %s72
      %p81 = scmp.eq.s32.totalorder %s19, 0
      %p82 = por %p80, %p81
      %p83 = scmp.ne.s32.totalorder %s71, %s72
      %p84 = scmp.eq.s32.totalorder %s20, 7
      %p85 = por %p83, %p84
      %p87 = scmp.ne.s32.totalorder %s72, %s86
      %p88 = scmp.eq.s32.totalorder %s20, 0
      %p89 = por %p87, %p88
      %s90 = ssub.s32 %s14, %s21
      %p91 = scmp.eq.s32.totalorder %s90, 0
      %s93 = sadd.s32 %s92, 1
      %s94 = scalar_select %p91, %s92, %s93
      %p97 = pneg %p91
      %p98 = scmp.eq.s32.totalorder %s14, 7
      %p99 = por %p97, %p98
      %p100 = scmp.ne.s32.totalorder %s92, %s95
      %p101 = scmp.eq.s32.totalorder %s14, 0
      %p102 = por %p100, %p101
      %p103 = scmp.ne.s32.totalorder %s92, %s95
      %p104 = scmp.eq.s32.totalorder %s19, 7
      %p105 = por %p103, %p104
      %p106 = scmp.ne.s32.totalorder %s95, %s96
      %p107 = scmp.eq.s32.totalorder %s19, 0
      %p108 = por %p106, %p107
      %p109 = scmp.ne.s32.totalorder %s95, %s96
      %p110 = scmp.eq.s32.totalorder %s20, 7
      %p111 = por %p109, %p110
      %p113 = scmp.ne.s32.totalorder %s96, %s112
      %p114 = scmp.eq.s32.totalorder %s20, 0
      %p115 = por %p113, %p114
      %p116 = scmp.le.s32.totalorder 1, %s14
      %p117 = scmp.lt.s32.totalorder %s14, 9
      %p118 = pnand %p116, %p117
      %p119 = pneg %p118
      // Predicated region
      $region9: #{tpu_custom_call.1} parent=5 // pred_check
        _
      $region10: #{tpu_custom_call.1} parent=5 // pred_check_branch
        %121 = sbr.rel (%p118) target = $region12
      $region11: #{tpu_custom_call.1} parent=5 // pred_region
        %s122 = ssub.s32 %s14, 1
        // Predicated region
        $region13: #{tpu_custom_call.1} parent=11 // pred_check
          %p123 = pneg %p61
        $region14: #{tpu_custom_call.1} parent=11 // pred_check_branch
          %125 = sbr.rel (%p123) target = $region16
        $region15: #{tpu_custom_call.1} parent=11 // pred_region
          %s127 = ssub.s32 3072, 3072
          %128 = vsyncadd [#allocation3], %s127
          %s129 = sshll.u32 [#allocation2], 4
          %s130 = int_to_ptr.vmem [resolvable:$true] %s129
          %135 = dma.hbm_to_vmem [thread:$0]  %s1, 3072, %s130, [#allocation3], 768, 768, 48
        $region16: #{tpu_custom_call.1} parent=11 // pred_fallthru
          _
        // Predicated region
        $region17: #{tpu_custom_call.1} parent=11 // pred_check
          %p136 = pneg %p82
        $region18: #{tpu_custom_call.1} parent=11 // pred_check_branch
          %138 = sbr.rel (%p136) target = $region20
        $region19: #{tpu_custom_call.1} parent=11 // pred_region
          %s140 = ssub.s32 96, 96
          %141 = vsyncadd [#allocation6], %s140
          %s143 = sshll.u32 [#allocation5], 4
          %s144 = int_to_ptr.vmem [resolvable:$true] %s143
          %146 = dma.hbm_to_vmem [thread:$0]  %s2, 96, %s144, [#allocation6]
        $region20: #{tpu_custom_call.1} parent=11 // pred_fallthru
          _
      $region12: #{tpu_custom_call.1} parent=5 // pred_fallthru
        _
      %p147 = scmp.lt.s32.totalorder %s14, 8
      // Predicated region
      $region21: #{tpu_custom_call.1} parent=5 // pred_check
        %p148 = pneg %p147
      $region22: #{tpu_custom_call.1} parent=5 // pred_check_branch
        %150 = sbr.rel (%p148) target = $region24
      $region23: #{tpu_custom_call.1} parent=5 // pred_region
        // Predicated region
        $region25: #{tpu_custom_call.1} parent=23 // pred_check
          %p151 = pneg %p34
        $region26: #{tpu_custom_call.1} parent=23 // pred_check_branch
          %153 = sbr.rel (%p151) target = $region28
        $region27: #{tpu_custom_call.1} parent=23 // pred_region
          %s154 = smul.u32 16, %s14
          %p155 = scmp.lt.s32.totalorder %s154, 127
          %s156 = scalar_select %p155, %s154, 127
          %s157 = smul.addr %s156, 8
          %s158 = scalar_lea.vmem %s0, %s157
          %s159 = smul.u32 16, %s14
        $region28: #{tpu_custom_call.1} parent=23 // pred_fallthru
          _
      $region24: #{tpu_custom_call.1} parent=5 // pred_fallthru
        _
      %p160 = scmp.le.s32.totalorder 1, %s14
      %p161 = scmp.lt.s32.totalorder %s14, 9
      %p162 = pnand %p160, %p161
      %p163 = pneg %p162
      // Predicated region
      $region29: #{tpu_custom_call.1} parent=5 // pred_check
        _
      $region30: #{tpu_custom_call.1} parent=5 // pred_check_branch
        %165 = sbr.rel (%p162) target = $region32
      $region31: #{tpu_custom_call.1} parent=5 // pred_region
        %s166 = ssub.s32 %s14, 1
        // Predicated region
        $region33: #{tpu_custom_call.1} parent=31 // pred_check
          %p167 = pneg %p61
        $region34: #{tpu_custom_call.1} parent=31 // pred_check_branch
          %169 = sbr.rel (%p167) target = $region36
        $region35: #{tpu_custom_call.1} parent=31 // pred_region
          %170 = dma.done [#allocation3], 3072
        $region36: #{tpu_custom_call.1} parent=31 // pred_fallthru
          _
        // Predicated region
        $region37: #{tpu_custom_call.1} parent=31 // pred_check
          %p171 = pneg %p82
        $region38: #{tpu_custom_call.1} parent=31 // pred_check_branch
          %173 = sbr.rel (%p171) target = $region40
        $region39: #{tpu_custom_call.1} parent=31 // pred_region
          %174 = dma.done [#allocation6], 96
        $region40: #{tpu_custom_call.1} parent=31 // pred_fallthru
          _
        %s175 = smul.u32 16, %s19
        %p176 = scmp.lt.s32.totalorder %s175, 127
        %s177 = scalar_select %p176, %s175, 127
        %s178 = smul.addr %s177, 8
        %s179 = scalar_lea.vmem %s0, %s178
        %p180 = pneg %p40
        %p181 = pneg %p37
        %p182 = pneg %p61
        %p183 = pneg %p58
        %p184 = pneg %p82
        %p185 = pneg %p79
        %p186 = pneg %p108
        %p187 = pneg %p105
        %s188 = sand.u32 %s95, 1
        %s189 = scalar_lea.sflag [#allocation4], %s188
        %s190 = sand.u32 %s95, 1
        %s191 = smul.addr %s190, 768
        %s192 = scalar_lea.vmem [#allocation7], %s191
        %s193 = smul.u32 16, %s19
        %p194 = scmp.lt.s32.totalorder %s193, 127
        %s195 = scalar_select %p194, %s193, 127
        %s196 = smul.addr %s195, 8
        %s197 = scalar_lea.vmem %s0, %s196
        %s198 = smul.u32 16, %s19
        %s199 = smul.u32 16, %s19
        %v200 = vld [vmem:[%s197] sm:$0xff]
        %v201 = vld [vmem:[%s197 + $0x8] sm:$0xff]
        %v202 = vld [vmem:[%s197 + $0x10] sm:$0xff]
        %v203 = vld [vmem:[%s197 + $0x18] sm:$0xff]
        %v204 = vld [vmem:[%s197 + $0x20] sm:$0xff]
        %v205 = vld [vmem:[%s197 + $0x28] sm:$0xff]
        %v206 = vld [vmem:[%s197 + $0x30] sm:$0xff]
        %v207 = vld [vmem:[%s197 + $0x38] sm:$0xff]
        %v208 = vld [vmem:[%s197 + $0x40] sm:$0xff]
        %v209 = vld [vmem:[%s197 + $0x48] sm:$0xff]
        %v210 = vld [vmem:[%s197 + $0x50] sm:$0xff]
        %v211 = vld [vmem:[%s197 + $0x58] sm:$0xff]
        %v212 = vld [vmem:[%s197 + $0x60] sm:$0xff]
        %v213 = vld [vmem:[%s197 + $0x68] sm:$0xff]
        %v214 = vld [vmem:[%s197 + $0x70] sm:$0xff]
        %v215 = vld [vmem:[%s197 + $0x78] sm:$0xff]
        %vm216 = vcmask 261120
        %v217 = vsel %vm216, %v200, 0.0
        %218 = vadd.xlane.f32.xlu0 %v217
        %v219 = vpop.xlane.xlu0 %218
        %v220 = vsel %vm216, %v201, 0.0
        %221 = vadd.xlane.f32.xlu0 %v220
        %v222 = vpop.xlane.xlu0 %221
        %v223 = vsel %vm216, %v202, 0.0
        %224 = vadd.xlane.f32.xlu0 %v223
        %v225 = vpop.xlane.xlu0 %224
        %v226 = vsel %vm216, %v203, 0.0
        %227 = vadd.xlane.f32.xlu0 %v226
        %v228 = vpop.xlane.xlu0 %227
        %v229 = vsel %vm216, %v204, 0.0
        %230 = vadd.xlane.f32.xlu0 %v229
        %v231 = vpop.xlane.xlu0 %230
        %v232 = vsel %vm216, %v205, 0.0
        %233 = vadd.xlane.f32.xlu0 %v232
        %v234 = vpop.xlane.xlu0 %233
        %v235 = vsel %vm216, %v206, 0.0
        %236 = vadd.xlane.f32.xlu0 %v235
        %v237 = vpop.xlane.xlu0 %236
        %v238 = vsel %vm216, %v207, 0.0
        %239 = vadd.xlane.f32.xlu0 %v238
        %v240 = vpop.xlane.xlu0 %239
        %v241 = vsel %vm216, %v208, 0.0
        %242 = vadd.xlane.f32.xlu0 %v241
        %v243 = vpop.xlane.xlu0 %242
        %v244 = vsel %vm216, %v209, 0.0
        %245 = vadd.xlane.f32.xlu0 %v244
        %v246 = vpop.xlane.xlu0 %245
        %v247 = vsel %vm216, %v210, 0.0
        %248 = vadd.xlane.f32.xlu0 %v247
        %v249 = vpop.xlane.xlu0 %248
        %v250 = vsel %vm216, %v211, 0.0
        %251 = vadd.xlane.f32.xlu0 %v250
        %v252 = vpop.xlane.xlu0 %251
        %v253 = vsel %vm216, %v212, 0.0
        %254 = vadd.xlane.f32.xlu0 %v253
        %v255 = vpop.xlane.xlu0 %254
        %v256 = vsel %vm216, %v213, 0.0
        %257 = vadd.xlane.f32.xlu0 %v256
        %v258 = vpop.xlane.xlu0 %257
        %v259 = vsel %vm216, %v214, 0.0
        %260 = vadd.xlane.f32.xlu0 %v259
        %v261 = vpop.xlane.xlu0 %260
        %v262 = vsel %vm216, %v215, 0.0
        %263 = vadd.xlane.f32.xlu0 %v262
        %v264 = vpop.xlane.xlu0 %263
        %v265 = vrcp.pop 32.0
        %v266 = vmul.f32 %v219, %v265
        %v267 = vmul.f32 %v222, %v265
        %v268 = vmul.f32 %v225, %v265
        %v269 = vmul.f32 %v228, %v265
        %v270 = vmul.f32 %v231, %v265
        %v271 = vmul.f32 %v234, %v265
        %v272 = vmul.f32 %v237, %v265
        %v273 = vmul.f32 %v240, %v265
        %v274 = vmul.f32 %v243, %v265
        %v275 = vmul.f32 %v246, %v265
        %v276 = vmul.f32 %v249, %v265
        %v277 = vmul.f32 %v252, %v265
        %v278 = vmul.f32 %v255, %v265
        %v279 = vmul.f32 %v258, %v265
        %v280 = vmul.f32 %v261, %v265
        %v281 = vmul.f32 %v264, %v265
        %v282 = vsub.f32 %v200, %v266
        %v283 = vsub.f32 %v201, %v267
        %v284 = vsub.f32 %v202, %v268
        %v285 = vsub.f32 %v203, %v269
        %v286 = vsub.f32 %v204, %v270
        %v287 = vsub.f32 %v205, %v271
        %v288 = vsub.f32 %v206, %v272
        %v289 = vsub.f32 %v207, %v273
        %v290 = vsub.f32 %v208, %v274
        %v291 = vsub.f32 %v209, %v275
        %v292 = vsub.f32 %v210, %v276
        %v293 = vsub.f32 %v211, %v277
        %v294 = vsub.f32 %v212, %v278
        %v295 = vsub.f32 %v213, %v279
        %v296 = vsub.f32 %v214, %v280
        %v297 = vsub.f32 %v215, %v281
        %v298 = vmul.f32 %v282, %v282
        %v299 = vmul.f32 %v283, %v283
        %v300 = vmul.f32 %v284, %v284
        %v301 = vmul.f32 %v285, %v285
        %v302 = vmul.f32 %v286, %v286
        %v303 = vmul.f32 %v287, %v287
        %v304 = vmul.f32 %v288, %v288
        %v305 = vmul.f32 %v289, %v289
        %v306 = vmul.f32 %v290, %v290
        %v307 = vmul.f32 %v291, %v291
        %v308 = vmul.f32 %v292, %v292
        %v309 = vmul.f32 %v293, %v293
        %v310 = vmul.f32 %v294, %v294
        %v311 = vmul.f32 %v295, %v295
        %v312 = vmul.f32 %v296, %v296
        %v313 = vmul.f32 %v297, %v297
        %v314 = vsel %vm216, %v298, 0.0
        %315 = vadd.xlane.f32.xlu0 %v314
        %v316 = vpop.xlane.xlu0 %315
        %v317 = vsel %vm216, %v299, 0.0
        %318 = vadd.xlane.f32.xlu0 %v317
        %v319 = vpop.xlane.xlu0 %318
        %v320 = vsel %vm216, %v300, 0.0
        %321 = vadd.xlane.f32.xlu0 %v320
        %v322 = vpop.xlane.xlu0 %321
        %v323 = vsel %vm216, %v301, 0.0
        %324 = vadd.xlane.f32.xlu0 %v323
        %v325 = vpop.xlane.xlu0 %324
        %v326 = vsel %vm216, %v302, 0.0
        %327 = vadd.xlane.f32.xlu0 %v326
        %v328 = vpop.xlane.xlu0 %327
        %v329 = vsel %vm216, %v303, 0.0
        %330 = vadd.xlane.f32.xlu0 %v329
        %v331 = vpop.xlane.xlu0 %330
        %v332 = vsel %vm216, %v304, 0.0
        %333 = vadd.xlane.f32.xlu0 %v332
        %v334 = vpop.xlane.xlu0 %333
        %v335 = vsel %vm216, %v305, 0.0
        %336 = vadd.xlane.f32.xlu0 %v335
        %v337 = vpop.xlane.xlu0 %336
        %v338 = vsel %vm216, %v306, 0.0
        %339 = vadd.xlane.f32.xlu0 %v338
        %v340 = vpop.xlane.xlu0 %339
        %v341 = vsel %vm216, %v307, 0.0
        %342 = vadd.xlane.f32.xlu0 %v341
        %v343 = vpop.xlane.xlu0 %342
        %v344 = vsel %vm216, %v308, 0.0
        %345 = vadd.xlane.f32.xlu0 %v344
        %v346 = vpop.xlane.xlu0 %345
        %v347 = vsel %vm216, %v309, 0.0
        %348 = vadd.xlane.f32.xlu0 %v347
        %v349 = vpop.xlane.xlu0 %348
        %v350 = vsel %vm216, %v310, 0.0
        %351 = vadd.xlane.f32.xlu0 %v350
        %v352 = vpop.xlane.xlu0 %351
        %v353 = vsel %vm216, %v311, 0.0
        %354 = vadd.xlane.f32.xlu0 %v353
        %v355 = vpop.xlane.xlu0 %354
        %v356 = vsel %vm216, %v312, 0.0
        %357 = vadd.xlane.f32.xlu0 %v356
        %v358 = vpop.xlane.xlu0 %357
        %v359 = vsel %vm216, %v313, 0.0
        %360 = vadd.xlane.f32.xlu0 %v359
        %v361 = vpop.xlane.xlu0 %360
        %v362 = vmul.f32 %v316, %v265
        %v363 = vmul.f32 %v319, %v265
        %v364 = vmul.f32 %v322, %v265
        %v365 = vmul.f32 %v325, %v265
        %v366 = vmul.f32 %v328, %v265
        %v367 = vmul.f32 %v331, %v265
        %v368 = vmul.f32 %v334, %v265
        %v369 = vmul.f32 %v337, %v265
        %v370 = vmul.f32 %v340, %v265
        %v371 = vmul.f32 %v343, %v265
        %v372 = vmul.f32 %v346, %v265
        %v373 = vmul.f32 %v349, %v265
        %v374 = vmul.f32 %v352, %v265
        %v375 = vmul.f32 %v355, %v265
        %v376 = vmul.f32 %v358, %v265
        %v377 = vmul.f32 %v361, %v265
        %v378 = vadd.f32 %v362, 1e-06
        %v379 = vadd.f32 %v363, 1e-06
        %v380 = vadd.f32 %v364, 1e-06
        %v381 = vadd.f32 %v365, 1e-06
        %v382 = vadd.f32 %v366, 1e-06
        %v383 = vadd.f32 %v367, 1e-06
        %v384 = vadd.f32 %v368, 1e-06
        %v385 = vadd.f32 %v369, 1e-06
        %v386 = vadd.f32 %v370, 1e-06
        %v387 = vadd.f32 %v371, 1e-06
        %v388 = vadd.f32 %v372, 1e-06
        %v389 = vadd.f32 %v373, 1e-06
        %v390 = vadd.f32 %v374, 1e-06
        %v391 = vadd.f32 %v375, 1e-06
        %v392 = vadd.f32 %v376, 1e-06
        %v393 = vadd.f32 %v377, 1e-06
        %v394 = vrsqrt.pop %v378
        %v395 = vrsqrt.pop %v379
        %v396 = vrsqrt.pop %v380
        %v397 = vrsqrt.pop %v381
        %v398 = vrsqrt.pop %v382
        %v399 = vrsqrt.pop %v383
        %v400 = vrsqrt.pop %v384
        %v401 = vrsqrt.pop %v385
        %v402 = vrsqrt.pop %v386
        %v403 = vrsqrt.pop %v387
        %v404 = vrsqrt.pop %v388
        %v405 = vrsqrt.pop %v389
        %v406 = vrsqrt.pop %v390
        %v407 = vrsqrt.pop %v391
        %v408 = vrsqrt.pop %v392
        %v409 = vrsqrt.pop %v393
        %v410 = vmul.f32 %v282, %v394
        %v411 = vmul.f32 %v283, %v395
        %v412 = vmul.f32 %v284, %v396
        %v413 = vmul.f32 %v285, %v397
        %v414 = vmul.f32 %v286, %v398
        %v415 = vmul.f32 %v287, %v399
        %v416 = vmul.f32 %v288, %v400
        %v417 = vmul.f32 %v289, %v401
        %v418 = vmul.f32 %v290, %v402
        %v419 = vmul.f32 %v291, %v403
        %v420 = vmul.f32 %v292, %v404
        %v421 = vmul.f32 %v293, %v405
        %v422 = vmul.f32 %v294, %v406
        %v423 = vmul.f32 %v295, %v407
        %v424 = vmul.f32 %v296, %v408
        %v425 = vmul.f32 %v297, %v409
        %v426 = vld [vmem:[#allocation2] sm:$0xff]
        %v427 = vld [vmem:[#allocation2 + $0x8] sm:$0xff]
        %v428 = vld [vmem:[#allocation2 + $0x10] sm:$0xff]
        %v429 = vld [vmem:[#allocation2 + $0x18] sm:$0xff]
        %v430 = vld [vmem:[#allocation2 + $0x20] sm:$0xff]
        %v431 = vld [vmem:[#allocation2 + $0x28] sm:$0xff]
        %v432 = vld [vmem:[#allocation2 + $0x30] sm:$0xff]
        %v433 = vld [vmem:[#allocation2 + $0x38] sm:$0xff]
        %v434 = vld [vmem:[#allocation2 + $0x40] sm:$0xff]
        %v435 = vld [vmem:[#allocation2 + $0x48] sm:$0xff]
        %v436 = vld [vmem:[#allocation2 + $0x50] sm:$0xff]
        %v437 = vld [vmem:[#allocation2 + $0x58] sm:$0xff]
        %v438 = vld [vmem:[#allocation2 + $0x60] sm:$0xff]
        %v439 = vld [vmem:[#allocation2 + $0x68] sm:$0xff]
        %v440 = vld [vmem:[#allocation2 + $0x70] sm:$0xff]
        %v441 = vld [vmem:[#allocation2 + $0x78] sm:$0xff]
        %v442 = vld [vmem:[#allocation2 + $0x80] sm:$0xff]
        %v443 = vld [vmem:[#allocation2 + $0x88] sm:$0xff]
        %v444 = vld [vmem:[#allocation2 + $0x90] sm:$0xff]
        %v445 = vld [vmem:[#allocation2 + $0x98] sm:$0xff]
        %v446 = vld [vmem:[#allocation2 + $0xa0] sm:$0xff]
        %v447 = vld [vmem:[#allocation2 + $0xa8] sm:$0xff]
        %v448 = vld [vmem:[#allocation2 + $0xb0] sm:$0xff]
        %v449 = vld [vmem:[#allocation2 + $0xb8] sm:$0xff]
        %v450 = vld [vmem:[#allocation5] sm:$0x3f]
        %v452 = vlaneseq
        %v453 = vshrl.u32 %v452, 7
        %v454 = vsub.s32 0, %v453
        %v455 = vrot.slane %v450, %v454
        %v456 = vlaneseq
        %v457 = vshrl.u32 %v456, 7
        %v458 = vsub.s32 1, %v457
        %v459 = vrot.slane %v450, %v458
        %v460 = vlaneseq
        %v461 = vshrl.u32 %v460, 7
        %v462 = vsub.s32 2, %v461
        %v463 = vrot.slane %v450, %v462
        %v464 = vlaneseq
        %v465 = vshrl.u32 %v464, 7
        %v466 = vsub.s32 3, %v465
        %v467 = vrot.slane %v450, %v466
        %v468 = vlaneseq
        %v469 = vshrl.u32 %v468, 7
        %v470 = vsub.s32 4, %v469
        %v471 = vrot.slane %v450, %v470
        %v472 = vlaneseq
        %v473 = vshrl.u32 %v472, 7
        %v474 = vsub.s32 5, %v473
        %v475 = vrot.slane %v450, %v474
        %v483 = vsel %vm216, %v410, 0
        %v486 = vsel %vm216, %v411, 0
        %v489 = vsel %vm216, %v412, 0
        %v492 = vsel %vm216, %v413, 0
        %v495 = vsel %vm216, %v414, 0
        %v498 = vsel %vm216, %v415, 0
        %v501 = vsel %vm216, %v416, 0
        %v504 = vsel %vm216, %v417, 0
        %v507 = vsel %vm216, %v418, 0
        %v510 = vsel %vm216, %v419, 0
        %v513 = vsel %vm216, %v420, 0
        %v516 = vsel %vm216, %v421, 0
        %v519 = vsel %vm216, %v422, 0
        %v522 = vsel %vm216, %v423, 0
        %v525 = vsel %vm216, %v424, 0
        %v528 = vsel %vm216, %v425, 0
        %530 = vmatprep.subr.mxu0 0.0
        %531 = vmatpush1.msra.mxu0 0.0
        %532 = vmatprep.subr.mxu0 0.0
        %533 = vmatpush1.msra.mxu0 0.0
        %534 = vmatprep.subr.mxu0 0.0
        %535 = vmatpush1.msra.mxu0 0.0
        %536 = vmatprep.subr.mxu0 0.0
        %537 = vmatpush1.msra.mxu0 0.0
        %538 = vmatprep.subr.mxu0 0.0
        %539 = vmatpush1.msra.mxu0 0.0
        %540 = vmatprep.subr.mxu0 0.0
        %541 = vmatpush1.msra.mxu0 0.0
        %542 = vmatprep.subr.mxu0 0.0
        %543 = vmatpush1.msra.mxu0 0.0
        %544 = vmatprep.subr.mxu0 0.0
        %545 = vmatpush1.msra.mxu0 0.0
        %546 = vmatprep.subr.mxu0 0.0
        %547 = vmatpush1.msra.mxu0 0.0
        %548 = vmatprep.subr.mxu0 0.0
        %549 = vmatpush1.msra.mxu0 0.0
        %550 = vmatprep.subr.mxu0 0.0
        %551 = vmatpush1.msra.mxu0 0.0
        %552 = vmatprep.subr.mxu0 0.0
        %553 = vmatpush1.msra.mxu0 0.0
        %554 = vmatprep.subr.mxu0 %v445
        %555 = vmatpush1.msra.mxu0 %v444
        %556 = vmatprep.subr.mxu0 %v439
        %557 = vmatpush1.msra.mxu0 %v438
        %558 = vmatprep.subr.mxu0 %v433
        %559 = vmatpush1.msra.mxu0 %v432
        %560 = vmatprep.subr.mxu0 %v427
        %561 = vmatpush1.msra.mxu0 %v426
        %562 = vmatprep.subr.mxu0 0.0
        %563 = vmatpush2.msra.mxu0 0.0
        %564 = vmatprep.subr.mxu0 0.0
        %565 = vmatpush2.msra.mxu0 0.0
        %566 = vmatprep.subr.mxu0 0.0
        %567 = vmatpush2.msra.mxu0 0.0
        %568 = vmatprep.subr.mxu0 0.0
        %569 = vmatpush2.msra.mxu0 0.0
        %570 = vmatprep.subr.mxu0 0.0
        %571 = vmatpush2.msra.mxu0 0.0
        %572 = vmatprep.subr.mxu0 0.0
        %573 = vmatpush2.msra.mxu0 0.0
        %574 = vmatprep.subr.mxu0 0.0
        %575 = vmatpush2.msra.mxu0 0.0
        %576 = vmatprep.subr.mxu0 0.0
        %577 = vmatpush2.msra.mxu0 0.0
        %578 = vmatprep.subr.mxu0 0.0
        %579 = vmatpush2.msra.mxu0 0.0
        %580 = vmatprep.subr.mxu0 0.0
        %581 = vmatpush2.msra.mxu0 0.0
        %582 = vmatprep.subr.mxu0 0.0
        %583 = vmatpush2.msra.mxu0 0.0
        %584 = vmatprep.subr.mxu0 0.0
        %585 = vmatpush2.msra.mxu0 0.0
        %586 = vmatprep.subr.mxu0 0.0
        %587 = vmatpush2.msra.mxu0 0.0
        %588 = vmatprep.subr.mxu0 0.0
        %589 = vmatpush2.msra.mxu0 0.0
        %590 = vmatprep.subr.mxu0 0.0
        %591 = vmatpush2.msra.mxu0 0.0
        %592 = vmatprep.subr.mxu0 0.0
        %593 = vmatpush2.msra.mxu0 0.0
        %594 = vmatprep.mubr.f32.mxu0 0.0
        %595 = vmatmul.mubr.f32.gmra.mxu0 %v483
        %v596 = vpop.f32.mrf.mxu0
        %v597 = vadd.f32 %v455, %v596
        %v598 = vpop.f32.mrf.mxu0
        %v599 = vadd.f32 %v459, %v598
        %600 = vmatprep.mubr.f32.mxu0 0.0
        %601 = vmatmul.mubr.f32.gmra.mxu0 %v486
        %v602 = vpop.f32.mrf.mxu0
        %v603 = vadd.f32 %v455, %v602
        %v604 = vpop.f32.mrf.mxu0
        %v605 = vadd.f32 %v459, %v604
        %606 = vmatprep.mubr.f32.mxu0 0.0
        %607 = vmatmul.mubr.f32.gmra.mxu0 %v489
        %v608 = vpop.f32.mrf.mxu0
        %v609 = vadd.f32 %v455, %v608
        %v610 = vpop.f32.mrf.mxu0
        %v611 = vadd.f32 %v459, %v610
        %612 = vmatprep.mubr.f32.mxu0 0.0
        %613 = vmatmul.mubr.f32.gmra.mxu0 %v492
        %v614 = vpop.f32.mrf.mxu0
        %v615 = vadd.f32 %v455, %v614
        %v616 = vpop.f32.mrf.mxu0
        %v617 = vadd.f32 %v459, %v616
        %618 = vmatprep.mubr.f32.mxu0 0.0
        %619 = vmatmul.mubr.f32.gmra.mxu0 %v495
        %v620 = vpop.f32.mrf.mxu0
        %v621 = vadd.f32 %v455, %v620
        %v622 = vpop.f32.mrf.mxu0
        %v623 = vadd.f32 %v459, %v622
        %624 = vmatprep.mubr.f32.mxu0 0.0
        %625 = vmatmul.mubr.f32.gmra.mxu0 %v498
        %v626 = vpop.f32.mrf.mxu0
        %v627 = vadd.f32 %v455, %v626
        %v628 = vpop.f32.mrf.mxu0
        %v629 = vadd.f32 %v459, %v628
        %630 = vmatprep.mubr.f32.mxu0 0.0
        %631 = vmatmul.mubr.f32.gmra.mxu0 %v501
        %v632 = vpop.f32.mrf.mxu0
        %v633 = vadd.f32 %v455, %v632
        %v634 = vpop.f32.mrf.mxu0
        %v635 = vadd.f32 %v459, %v634
        %636 = vmatprep.mubr.f32.mxu0 0.0
        %637 = vmatmul.mubr.f32.gmra.mxu0 %v504
        %v638 = vpop.f32.mrf.mxu0
        %v639 = vadd.f32 %v455, %v638
        %v640 = vpop.f32.mrf.mxu0
        %v641 = vadd.f32 %v459, %v640
        %642 = vmatprep.mubr.f32.mxu0 0.0
        %643 = vmatmul.mubr.f32.gmra.mxu0 %v507
        %v644 = vpop.f32.mrf.mxu0
        %v645 = vadd.f32 %v455, %v644
        %v646 = vpop.f32.mrf.mxu0
        %v647 = vadd.f32 %v459, %v646
        %648 = vmatprep.mubr.f32.mxu0 0.0
        %649 = vmatmul.mubr.f32.gmra.mxu0 %v510
        %v650 = vpop.f32.mrf.mxu0
        %v651 = vadd.f32 %v455, %v650
        %v652 = vpop.f32.mrf.mxu0
        %v653 = vadd.f32 %v459, %v652
        %654 = vmatprep.mubr.f32.mxu0 0.0
        %655 = vmatmul.mubr.f32.gmra.mxu0 %v513
        %v656 = vpop.f32.mrf.mxu0
        %v657 = vadd.f32 %v455, %v656
        %v658 = vpop.f32.mrf.mxu0
        %v659 = vadd.f32 %v459, %v658
        %660 = vmatprep.mubr.f32.mxu0 0.0
        %661 = vmatmul.mubr.f32.gmra.mxu0 %v516
        %v662 = vpop.f32.mrf.mxu0
        %v663 = vadd.f32 %v455, %v662
        %v664 = vpop.f32.mrf.mxu0
        %v665 = vadd.f32 %v459, %v664
        %666 = vmatprep.mubr.f32.mxu0 0.0
        %667 = vmatmul.mubr.f32.gmra.mxu0 %v519
        %v668 = vpop.f32.mrf.mxu0
        %v669 = vadd.f32 %v455, %v668
        %v670 = vpop.f32.mrf.mxu0
        %v671 = vadd.f32 %v459, %v670
        %672 = vmatprep.mubr.f32.mxu0 0.0
        %673 = vmatmul.mubr.f32.gmra.mxu0 %v522
        %v674 = vpop.f32.mrf.mxu0
        %v675 = vadd.f32 %v455, %v674
        %v676 = vpop.f32.mrf.mxu0
        %v677 = vadd.f32 %v459, %v676
        %678 = vmatprep.mubr.f32.mxu0 0.0
        %679 = vmatmul.mubr.f32.gmra.mxu0 %v525
        %v680 = vpop.f32.mrf.mxu0
        %v681 = vadd.f32 %v455, %v680
        %v682 = vpop.f32.mrf.mxu0
        %v683 = vadd.f32 %v459, %v682
        %684 = vmatprep.mubr.f32.mxu0 0.0
        %685 = vmatmul.mubr.f32.gmra.mxu0 %v528
        %v686 = vpop.f32.mrf.mxu0
        %v687 = vadd.f32 %v455, %v686
        %v688 = vpop.f32.mrf.mxu0
        %v689 = vadd.f32 %v459, %v688
        %690 = vdwg.mxu0
        %691 = vmatprep.subr.mxu0 0.0
        %692 = vmatpush1.msra.mxu0 0.0
        %693 = vmatprep.subr.mxu0 0.0
        %694 = vmatpush1.msra.mxu0 0.0
        %695 = vmatprep.subr.mxu0 0.0
        %696 = vmatpush1.msra.mxu0 0.0
        %697 = vmatprep.subr.mxu0 0.0
        %698 = vmatpush1.msra.mxu0 0.0
        %699 = vmatprep.subr.mxu0 0.0
        %700 = vmatpush1.msra.mxu0 0.0
        %701 = vmatprep.subr.mxu0 0.0
        %702 = vmatpush1.msra.mxu0 0.0
        %703 = vmatprep.subr.mxu0 0.0
        %704 = vmatpush1.msra.mxu0 0.0
        %705 = vmatprep.subr.mxu0 0.0
        %706 = vmatpush1.msra.mxu0 0.0
        %707 = vmatprep.subr.mxu0 0.0
        %708 = vmatpush1.msra.mxu0 0.0
        %709 = vmatprep.subr.mxu0 0.0
        %710 = vmatpush1.msra.mxu0 0.0
        %711 = vmatprep.subr.mxu0 0.0
        %712 = vmatpush1.msra.mxu0 0.0
        %713 = vmatprep.subr.mxu0 0.0
        %714 = vmatpush1.msra.mxu0 0.0
        %715 = vmatprep.subr.mxu0 %v447
        %716 = vmatpush1.msra.mxu0 %v446
        %717 = vmatprep.subr.mxu0 %v441
        %718 = vmatpush1.msra.mxu0 %v440
        %719 = vmatprep.subr.mxu0 %v435
        %720 = vmatpush1.msra.mxu0 %v434
        %721 = vmatprep.subr.mxu0 %v429
        %722 = vmatpush1.msra.mxu0 %v428
        %723 = vmatprep.subr.mxu0 0.0
        %724 = vmatpush2.msra.mxu0 0.0
        %725 = vmatprep.subr.mxu0 0.0
        %726 = vmatpush2.msra.mxu0 0.0
        %727 = vmatprep.subr.mxu0 0.0
        %728 = vmatpush2.msra.mxu0 0.0
        %729 = vmatprep.subr.mxu0 0.0
        %730 = vmatpush2.msra.mxu0 0.0
        %731 = vmatprep.subr.mxu0 0.0
        %732 = vmatpush2.msra.mxu0 0.0
        %733 = vmatprep.subr.mxu0 0.0
        %734 = vmatpush2.msra.mxu0 0.0
        %735 = vmatprep.subr.mxu0 0.0
        %736 = vmatpush2.msra.mxu0 0.0
        %737 = vmatprep.subr.mxu0 0.0
        %738 = vmatpush2.msra.mxu0 0.0
        %739 = vmatprep.subr.mxu0 0.0
        %740 = vmatpush2.msra.mxu0 0.0
        %741 = vmatprep.subr.mxu0 0.0
        %742 = vmatpush2.msra.mxu0 0.0
        %743 = vmatprep.subr.mxu0 0.0
        %744 = vmatpush2.msra.mxu0 0.0
        %745 = vmatprep.subr.mxu0 0.0
        %746 = vmatpush2.msra.mxu0 0.0
        %747 = vmatprep.subr.mxu0 0.0
        %748 = vmatpush2.msra.mxu0 0.0
        %749 = vmatprep.subr.mxu0 0.0
        %750 = vmatpush2.msra.mxu0 0.0
        %751 = vmatprep.subr.mxu0 0.0
        %752 = vmatpush2.msra.mxu0 0.0
        %753 = vmatprep.subr.mxu0 0.0
        %754 = vmatpush2.msra.mxu0 0.0
        %755 = vmatprep.mubr.f32.mxu0 0.0
        %756 = vmatmul.mubr.f32.gmra.mxu0 %v483
        %v757 = vpop.f32.mrf.mxu0
        %v758 = vadd.f32 %v463, %v757
        %v759 = vpop.f32.mrf.mxu0
        %v760 = vadd.f32 %v467, %v759
        %761 = vmatprep.mubr.f32.mxu0 0.0
        %762 = vmatmul.mubr.f32.gmra.mxu0 %v486
        %v763 = vpop.f32.mrf.mxu0
        %v764 = vadd.f32 %v463, %v763
        %v765 = vpop.f32.mrf.mxu0
        %v766 = vadd.f32 %v467, %v765
        %767 = vmatprep.mubr.f32.mxu0 0.0
        %768 = vmatmul.mubr.f32.gmra.mxu0 %v489
        %v769 = vpop.f32.mrf.mxu0
        %v770 = vadd.f32 %v463, %v769
        %v771 = vpop.f32.mrf.mxu0
        %v772 = vadd.f32 %v467, %v771
        %773 = vmatprep.mubr.f32.mxu0 0.0
        %774 = vmatmul.mubr.f32.gmra.mxu0 %v492
        %v775 = vpop.f32.mrf.mxu0
        %v776 = vadd.f32 %v463, %v775
        %v777 = vpop.f32.mrf.mxu0
        %v778 = vadd.f32 %v467, %v777
        %779 = vmatprep.mubr.f32.mxu0 0.0
        %780 = vmatmul.mubr.f32.gmra.mxu0 %v495
        %v781 = vpop.f32.mrf.mxu0
        %v782 = vadd.f32 %v463, %v781
        %v783 = vpop.f32.mrf.mxu0
        %v784 = vadd.f32 %v467, %v783
        %785 = vmatprep.mubr.f32.mxu0 0.0
        %786 = vmatmul.mubr.f32.gmra.mxu0 %v498
        %v787 = vpop.f32.mrf.mxu0
        %v788 = vadd.f32 %v463, %v787
        %v789 = vpop.f32.mrf.mxu0
        %v790 = vadd.f32 %v467, %v789
        %791 = vmatprep.mubr.f32.mxu0 0.0
        %792 = vmatmul.mubr.f32.gmra.mxu0 %v501
        %v793 = vpop.f32.mrf.mxu0
        %v794 = vadd.f32 %v463, %v793
        %v795 = vpop.f32.mrf.mxu0
        %v796 = vadd.f32 %v467, %v795
        %797 = vmatprep.mubr.f32.mxu0 0.0
        %798 = vmatmul.mubr.f32.gmra.mxu0 %v504
        %v799 = vpop.f32.mrf.mxu0
        %v800 = vadd.f32 %v463, %v799
        %v801 = vpop.f32.mrf.mxu0
        %v802 = vadd.f32 %v467, %v801
        %803 = vmatprep.mubr.f32.mxu0 0.0
        %804 = vmatmul.mubr.f32.gmra.mxu0 %v507
        %v805 = vpop.f32.mrf.mxu0
        %v806 = vadd.f32 %v463, %v805
        %v807 = vpop.f32.mrf.mxu0
        %v808 = vadd.f32 %v467, %v807
        %809 = vmatprep.mubr.f32.mxu0 0.0
        %810 = vmatmul.mubr.f32.gmra.mxu0 %v510
        %v811 = vpop.f32.mrf.mxu0
        %v812 = vadd.f32 %v463, %v811
        %v813 = vpop.f32.mrf.mxu0
        %v814 = vadd.f32 %v467, %v813
        %815 = vmatprep.mubr.f32.mxu0 0.0
        %816 = vmatmul.mubr.f32.gmra.mxu0 %v513
        %v817 = vpop.f32.mrf.mxu0
        %v818 = vadd.f32 %v463, %v817
        %v819 = vpop.f32.mrf.mxu0
        %v820 = vadd.f32 %v467, %v819
        %821 = vmatprep.mubr.f32.mxu0 0.0
        %822 = vmatmul.mubr.f32.gmra.mxu0 %v516
        %v823 = vpop.f32.mrf.mxu0
        %v824 = vadd.f32 %v463, %v823
        %v825 = vpop.f32.mrf.mxu0
        %v826 = vadd.f32 %v467, %v825
        %827 = vmatprep.mubr.f32.mxu0 0.0
        %828 = vmatmul.mubr.f32.gmra.mxu0 %v519
        %v829 = vpop.f32.mrf.mxu0
        %v830 = vadd.f32 %v463, %v829
        %v831 = vpop.f32.mrf.mxu0
        %v832 = vadd.f32 %v467, %v831
        %833 = vmatprep.mubr.f32.mxu0 0.0
        %834 = vmatmul.mubr.f32.gmra.mxu0 %v522
        %v835 = vpop.f32.mrf.mxu0
        %v836 = vadd.f32 %v463, %v835
        %v837 = vpop.f32.mrf.mxu0
        %v838 = vadd.f32 %v467, %v837
        %839 = vmatprep.mubr.f32.mxu0 0.0
        %840 = vmatmul.mubr.f32.gmra.mxu0 %v525
        %v841 = vpop.f32.mrf.mxu0
        %v842 = vadd.f32 %v463, %v841
        %v843 = vpop.f32.mrf.mxu0
        %v844 = vadd.f32 %v467, %v843
        %845 = vmatprep.mubr.f32.mxu0 0.0
        %846 = vmatmul.mubr.f32.gmra.mxu0 %v528
        %v847 = vpop.f32.mrf.mxu0
        %v848 = vadd.f32 %v463, %v847
        %v849 = vpop.f32.mrf.mxu0
        %v850 = vadd.f32 %v467, %v849
        %851 = vdwg.mxu0
        %852 = vmatprep.subr.mxu0 0.0
        %853 = vmatpush1.msra.mxu0 0.0
        %854 = vmatprep.subr.mxu0 0.0
        %855 = vmatpush1.msra.mxu0 0.0
        %856 = vmatprep.subr.mxu0 0.0
        %857 = vmatpush1.msra.mxu0 0.0
        %858 = vmatprep.subr.mxu0 0.0
        %859 = vmatpush1.msra.mxu0 0.0
        %860 = vmatprep.subr.mxu0 0.0
        %861 = vmatpush1.msra.mxu0 0.0
        %862 = vmatprep.subr.mxu0 0.0
        %863 = vmatpush1.msra.mxu0 0.0
        %864 = vmatprep.subr.mxu0 0.0
        %865 = vmatpush1.msra.mxu0 0.0
        %866 = vmatprep.subr.mxu0 0.0
        %867 = vmatpush1.msra.mxu0 0.0
        %868 = vmatprep.subr.mxu0 0.0
        %869 = vmatpush1.msra.mxu0 0.0
        %870 = vmatprep.subr.mxu0 0.0
        %871 = vmatpush1.msra.mxu0 0.0
        %872 = vmatprep.subr.mxu0 0.0
        %873 = vmatpush1.msra.mxu0 0.0
        %874 = vmatprep.subr.mxu0 0.0
        %875 = vmatpush1.msra.mxu0 0.0
        %876 = vmatprep.subr.mxu0 %v449
        %877 = vmatpush1.msra.mxu0 %v448
        %878 = vmatprep.subr.mxu0 %v443
        %879 = vmatpush1.msra.mxu0 %v442
        %880 = vmatprep.subr.mxu0 %v437
        %881 = vmatpush1.msra.mxu0 %v436
        %882 = vmatprep.subr.mxu0 %v431
        %883 = vmatpush1.msra.mxu0 %v430
        %884 = vmatprep.subr.mxu0 0.0
        %885 = vmatpush2.msra.mxu0 0.0
        %886 = vmatprep.subr.mxu0 0.0
        %887 = vmatpush2.msra.mxu0 0.0
        %888 = vmatprep.subr.mxu0 0.0
        %889 = vmatpush2.msra.mxu0 0.0
        %890 = vmatprep.subr.mxu0 0.0
        %891 = vmatpush2.msra.mxu0 0.0
        %892 = vmatprep.subr.mxu0 0.0
        %893 = vmatpush2.msra.mxu0 0.0
        %894 = vmatprep.subr.mxu0 0.0
        %895 = vmatpush2.msra.mxu0 0.0
        %896 = vmatprep.subr.mxu0 0.0
        %897 = vmatpush2.msra.mxu0 0.0
        %898 = vmatprep.subr.mxu0 0.0
        %899 = vmatpush2.msra.mxu0 0.0
        %900 = vmatprep.subr.mxu0 0.0
        %901 = vmatpush2.msra.mxu0 0.0
        %902 = vmatprep.subr.mxu0 0.0
        %903 = vmatpush2.msra.mxu0 0.0
        %904 = vmatprep.subr.mxu0 0.0
        %905 = vmatpush2.msra.mxu0 0.0
        %906 = vmatprep.subr.mxu0 0.0
        %907 = vmatpush2.msra.mxu0 0.0
        %908 = vmatprep.subr.mxu0 0.0
        %909 = vmatpush2.msra.mxu0 0.0
        %910 = vmatprep.subr.mxu0 0.0
        %911 = vmatpush2.msra.mxu0 0.0
        %912 = vmatprep.subr.mxu0 0.0
        %913 = vmatpush2.msra.mxu0 0.0
        %914 = vmatprep.subr.mxu0 0.0
        %915 = vmatpush2.msra.mxu0 0.0
        %916 = vmatprep.mubr.f32.mxu0 0.0
        %917 = vmatmul.mubr.f32.gmra.mxu0 %v483
        %v918 = vpop.f32.mrf.mxu0
        %v919 = vadd.f32 %v471, %v918
        %v920 = vpop.f32.mrf.mxu0
        %v921 = vadd.f32 %v475, %v920
        %922 = vmatprep.mubr.f32.mxu0 0.0
        %923 = vmatmul.mubr.f32.gmra.mxu0 %v486
        %v924 = vpop.f32.mrf.mxu0
        %v925 = vadd.f32 %v471, %v924
        %v926 = vpop.f32.mrf.mxu0
        %v927 = vadd.f32 %v475, %v926
        %928 = vmatprep.mubr.f32.mxu0 0.0
        %929 = vmatmul.mubr.f32.gmra.mxu0 %v489
        %v930 = vpop.f32.mrf.mxu0
        %v931 = vadd.f32 %v471, %v930
        %v932 = vpop.f32.mrf.mxu0
        %v933 = vadd.f32 %v475, %v932
        %934 = vmatprep.mubr.f32.mxu0 0.0
        %935 = vmatmul.mubr.f32.gmra.mxu0 %v492
        %v936 = vpop.f32.mrf.mxu0
        %v937 = vadd.f32 %v471, %v936
        %v938 = vpop.f32.mrf.mxu0
        %v939 = vadd.f32 %v475, %v938
        %940 = vmatprep.mubr.f32.mxu0 0.0
        %941 = vmatmul.mubr.f32.gmra.mxu0 %v495
        %v942 = vpop.f32.mrf.mxu0
        %v943 = vadd.f32 %v471, %v942
        %v944 = vpop.f32.mrf.mxu0
        %v945 = vadd.f32 %v475, %v944
        %946 = vmatprep.mubr.f32.mxu0 0.0
        %947 = vmatmul.mubr.f32.gmra.mxu0 %v498
        %v948 = vpop.f32.mrf.mxu0
        %v949 = vadd.f32 %v471, %v948
        %v950 = vpop.f32.mrf.mxu0
        %v951 = vadd.f32 %v475, %v950
        %952 = vmatprep.mubr.f32.mxu0 0.0
        %953 = vmatmul.mubr.f32.gmra.mxu0 %v501
        %v954 = vpop.f32.mrf.mxu0
        %v955 = vadd.f32 %v471, %v954
        %v956 = vpop.f32.mrf.mxu0
        %v957 = vadd.f32 %v475, %v956
        %958 = vmatprep.mubr.f32.mxu0 0.0
        %959 = vmatmul.mubr.f32.gmra.mxu0 %v504
        %v960 = vpop.f32.mrf.mxu0
        %v961 = vadd.f32 %v471, %v960
        %v962 = vpop.f32.mrf.mxu0
        %v963 = vadd.f32 %v475, %v962
        %964 = vmatprep.mubr.f32.mxu0 0.0
        %965 = vmatmul.mubr.f32.gmra.mxu0 %v507
        %v966 = vpop.f32.mrf.mxu0
        %v967 = vadd.f32 %v471, %v966
        %v968 = vpop.f32.mrf.mxu0
        %v969 = vadd.f32 %v475, %v968
        %970 = vmatprep.mubr.f32.mxu0 0.0
        %971 = vmatmul.mubr.f32.gmra.mxu0 %v510
        %v972 = vpop.f32.mrf.mxu0
        %v973 = vadd.f32 %v471, %v972
        %v974 = vpop.f32.mrf.mxu0
        %v975 = vadd.f32 %v475, %v974
        %976 = vmatprep.mubr.f32.mxu0 0.0
        %977 = vmatmul.mubr.f32.gmra.mxu0 %v513
        %v978 = vpop.f32.mrf.mxu0
        %v979 = vadd.f32 %v471, %v978
        %v980 = vpop.f32.mrf.mxu0
        %v981 = vadd.f32 %v475, %v980
        %982 = vmatprep.mubr.f32.mxu0 0.0
        %983 = vmatmul.mubr.f32.gmra.mxu0 %v516
        %v984 = vpop.f32.mrf.mxu0
        %v985 = vadd.f32 %v471, %v984
        %v986 = vpop.f32.mrf.mxu0
        %v987 = vadd.f32 %v475, %v986
        %988 = vmatprep.mubr.f32.mxu0 0.0
        %989 = vmatmul.mubr.f32.gmra.mxu0 %v519
        %v990 = vpop.f32.mrf.mxu0
        %v991 = vadd.f32 %v471, %v990
        %v992 = vpop.f32.mrf.mxu0
        %v993 = vadd.f32 %v475, %v992
        %994 = vmatprep.mubr.f32.mxu0 0.0
        %995 = vmatmul.mubr.f32.gmra.mxu0 %v522
        %v996 = vpop.f32.mrf.mxu0
        %v997 = vadd.f32 %v471, %v996
        %v998 = vpop.f32.mrf.mxu0
        %v999 = vadd.f32 %v475, %v998
        %1000 = vmatprep.mubr.f32.mxu0 0.0
        %1001 = vmatmul.mubr.f32.gmra.mxu0 %v525
        %v1002 = vpop.f32.mrf.mxu0
        %v1003 = vadd.f32 %v471, %v1002
        %v1004 = vpop.f32.mrf.mxu0
        %v1005 = vadd.f32 %v475, %v1004
        %1006 = vmatprep.mubr.f32.mxu0 0.0
        %1007 = vmatmul.mubr.f32.gmra.mxu0 %v528
        %v1008 = vpop.f32.mrf.mxu0
        %v1009 = vadd.f32 %v471, %v1008
        %v1010 = vpop.f32.mrf.mxu0
        %v1011 = vadd.f32 %v475, %v1010
        %1012 = vdwg.mxu0
        %1013 = vst [vmem:[%s192] sm:$0xff] %v597
        %1014 = vst [vmem:[%s192 + $0x8] sm:$0xff] %v599
        %1015 = vst [vmem:[%s192 + $0x10] sm:$0xff] %v758
        %1016 = vst [vmem:[%s192 + $0x18] sm:$0xff] %v760
        %1017 = vst [vmem:[%s192 + $0x20] sm:$0xff] %v919
        %1018 = vst [vmem:[%s192 + $0x28] sm:$0xff] %v921
        %1019 = vst [vmem:[%s192 + $0x30] sm:$0xff] %v603
        %1020 = vst [vmem:[%s192 + $0x38] sm:$0xff] %v605
        %1021 = vst [vmem:[%s192 + $0x40] sm:$0xff] %v764
        %1022 = vst [vmem:[%s192 + $0x48] sm:$0xff] %v766
        %1023 = vst [vmem:[%s192 + $0x50] sm:$0xff] %v925
        %1024 = vst [vmem:[%s192 + $0x58] sm:$0xff] %v927
        %1025 = vst [vmem:[%s192 + $0x60] sm:$0xff] %v609
        %1026 = vst [vmem:[%s192 + $0x68] sm:$0xff] %v611
        %1027 = vst [vmem:[%s192 + $0x70] sm:$0xff] %v770
        %1028 = vst [vmem:[%s192 + $0x78] sm:$0xff] %v772
        %1029 = vst [vmem:[%s192 + $0x80] sm:$0xff] %v931
        %1030 = vst [vmem:[%s192 + $0x88] sm:$0xff] %v933
        %1031 = vst [vmem:[%s192 + $0x90] sm:$0xff] %v615
        %1032 = vst [vmem:[%s192 + $0x98] sm:$0xff] %v617
        %1033 = vst [vmem:[%s192 + $0xa0] sm:$0xff] %v776
        %1034 = vst [vmem:[%s192 + $0xa8] sm:$0xff] %v778
        %1035 = vst [vmem:[%s192 + $0xb0] sm:$0xff] %v937
        %1036 = vst [vmem:[%s192 + $0xb8] sm:$0xff] %v939
        %1037 = vst [vmem:[%s192 + $0xc0] sm:$0xff] %v621
        %1038 = vst [vmem:[%s192 + $0xc8] sm:$0xff] %v623
        %1039 = vst [vmem:[%s192 + $0xd0] sm:$0xff] %v782
        %1040 = vst [vmem:[%s192 + $0xd8] sm:$0xff] %v784
        %1041 = vst [vmem:[%s192 + $0xe0] sm:$0xff] %v943
        %1042 = vst [vmem:[%s192 + $0xe8] sm:$0xff] %v945
        %1043 = vst [vmem:[%s192 + $0xf0] sm:$0xff] %v627
        %1044 = vst [vmem:[%s192 + $0xf8] sm:$0xff] %v629
        %1045 = vst [vmem:[%s192 + $0x100] sm:$0xff] %v788
        %1046 = vst [vmem:[%s192 + $0x108] sm:$0xff] %v790
        %1047 = vst [vmem:[%s192 + $0x110] sm:$0xff] %v949
        %1048 = vst [vmem:[%s192 + $0x118] sm:$0xff] %v951
        %1049 = vst [vmem:[%s192 + $0x120] sm:$0xff] %v633
        %1050 = vst [vmem:[%s192 + $0x128] sm:$0xff] %v635
        %1051 = vst [vmem:[%s192 + $0x130] sm:$0xff] %v794
        %1052 = vst [vmem:[%s192 + $0x138] sm:$0xff] %v796
        %1053 = vst [vmem:[%s192 + $0x140] sm:$0xff] %v955
        %1054 = vst [vmem:[%s192 + $0x148] sm:$0xff] %v957
        %1055 = vst [vmem:[%s192 + $0x150] sm:$0xff] %v639
        %1056 = vst [vmem:[%s192 + $0x158] sm:$0xff] %v641
        %1057 = vst [vmem:[%s192 + $0x160] sm:$0xff] %v800
        %1058 = vst [vmem:[%s192 + $0x168] sm:$0xff] %v802
        %1059 = vst [vmem:[%s192 + $0x170] sm:$0xff] %v961
        %1060 = vst [vmem:[%s192 + $0x178] sm:$0xff] %v963
        %1061 = vst [vmem:[%s192 + $0x180] sm:$0xff] %v645
        %1062 = vst [vmem:[%s192 + $0x188] sm:$0xff] %v647
        %1063 = vst [vmem:[%s192 + $0x190] sm:$0xff] %v806
        %1064 = vst [vmem:[%s192 + $0x198] sm:$0xff] %v808
        %1065 = vst [vmem:[%s192 + $0x1a0] sm:$0xff] %v967
        %1066 = vst [vmem:[%s192 + $0x1a8] sm:$0xff] %v969
        %1067 = vst [vmem:[%s192 + $0x1b0] sm:$0xff] %v651
        %1068 = vst [vmem:[%s192 + $0x1b8] sm:$0xff] %v653
        %1069 = vst [vmem:[%s192 + $0x1c0] sm:$0xff] %v812
        %1070 = vst [vmem:[%s192 + $0x1c8] sm:$0xff] %v814
        %1071 = vst [vmem:[%s192 + $0x1d0] sm:$0xff] %v973
        %1072 = vst [vmem:[%s192 + $0x1d8] sm:$0xff] %v975
        %1073 = vst [vmem:[%s192 + $0x1e0] sm:$0xff] %v657
        %1074 = vst [vmem:[%s192 + $0x1e8] sm:$0xff] %v659
        %1075 = vst [vmem:[%s192 + $0x1f0] sm:$0xff] %v818
        %1076 = vst [vmem:[%s192 + $0x1f8] sm:$0xff] %v820
        %1077 = vst [vmem:[%s192 + $0x200] sm:$0xff] %v979
        %1078 = vst [vmem:[%s192 + $0x208] sm:$0xff] %v981
        %1079 = vst [vmem:[%s192 + $0x210] sm:$0xff] %v663
        %1080 = vst [vmem:[%s192 + $0x218] sm:$0xff] %v665
        %1081 = vst [vmem:[%s192 + $0x220] sm:$0xff] %v824
        %1082 = vst [vmem:[%s192 + $0x228] sm:$0xff] %v826
        %1083 = vst [vmem:[%s192 + $0x230] sm:$0xff] %v985
        %1084 = vst [vmem:[%s192 + $0x238] sm:$0xff] %v987
        %1085 = vst [vmem:[%s192 + $0x240] sm:$0xff] %v669
        %1086 = vst [vmem:[%s192 + $0x248] sm:$0xff] %v671
        %1087 = vst [vmem:[%s192 + $0x250] sm:$0xff] %v830
        %1088 = vst [vmem:[%s192 + $0x258] sm:$0xff] %v832
        %1089 = vst [vmem:[%s192 + $0x260] sm:$0xff] %v991
        %1090 = vst [vmem:[%s192 + $0x268] sm:$0xff] %v993
        %1091 = vst [vmem:[%s192 + $0x270] sm:$0xff] %v675
        %1092 = vst [vmem:[%s192 + $0x278] sm:$0xff] %v677
        %1093 = vst [vmem:[%s192 + $0x280] sm:$0xff] %v836
        %1094 = vst [vmem:[%s192 + $0x288] sm:$0xff] %v838
        %1095 = vst [vmem:[%s192 + $0x290] sm:$0xff] %v997
        %1096 = vst [vmem:[%s192 + $0x298] sm:$0xff] %v999
        %1097 = vst [vmem:[%s192 + $0x2a0] sm:$0xff] %v681
        %1098 = vst [vmem:[%s192 + $0x2a8] sm:$0xff] %v683
        %1099 = vst [vmem:[%s192 + $0x2b0] sm:$0xff] %v842
        %1100 = vst [vmem:[%s192 + $0x2b8] sm:$0xff] %v844
        %1101 = vst [vmem:[%s192 + $0x2c0] sm:$0xff] %v1003
        %1102 = vst [vmem:[%s192 + $0x2c8] sm:$0xff] %v1005
        %1103 = vst [vmem:[%s192 + $0x2d0] sm:$0xff] %v687
        %1104 = vst [vmem:[%s192 + $0x2d8] sm:$0xff] %v689
        %1105 = vst [vmem:[%s192 + $0x2e0] sm:$0xff] %v848
        %1106 = vst [vmem:[%s192 + $0x2e8] sm:$0xff] %v850
        %1107 = vst [vmem:[%s192 + $0x2f0] sm:$0xff] %v1009
        %1108 = vst [vmem:[%s192 + $0x2f8] sm:$0xff] %v1011
        %s1109 = sand.u32 %s95, 1
        %s1110 = scalar_lea.sflag [#allocation4], %s1109
        %s1111 = sand.u32 %s95, 1
        %s1112 = smul.addr %s1111, 768
        %s1113 = scalar_lea.vmem [#allocation7], %s1112
        // Predicated region
        $region41: #{tpu_custom_call.1} parent=31 // pred_check
          %p1114 = pneg %p105
        $region42: #{tpu_custom_call.1} parent=31 // pred_check_branch
          %1116 = sbr.rel (%p1114) target = $region44
        $region43: #{tpu_custom_call.1} parent=31 // pred_region
          %s1117 = smul.u32 16, %s19
          %s1119 = ssub.s32 12288, 12288
          %1120 = vsyncadd %s1110, %s1119
          %s1121 = smul.addr %s1117, 6
          %s1122 = smul.addr %s1121, 128
          %s1123 = scalar_lea.hbm %s3, %s1122
          %s1124 = sshll.u32 %s1113, 4
          %s1125 = int_to_ptr.vmem [resolvable:$true] %s1124
          %1130 = dma.vmem_to_hbm [thread:$0]  %s1125, 12288, %s1123, %s1110, 768, 768, 48
        $region44: #{tpu_custom_call.1} parent=31 // pred_fallthru
          _
      $region32: #{tpu_custom_call.1} parent=5 // pred_fallthru
        _
      %p1131 = scmp.le.s32.totalorder 2, %s14
      // Predicated region
      $region45: #{tpu_custom_call.1} parent=5 // pred_check
        %p1132 = pneg %p1131
      $region46: #{tpu_custom_call.1} parent=5 // pred_check_branch
        %1134 = sbr.rel (%p1132) target = $region48
      $region47: #{tpu_custom_call.1} parent=5 // pred_region
        %s1135 = ssub.s32 %s14, 2
        // Predicated region
        $region49: #{tpu_custom_call.1} parent=47 // pred_check
          %p1136 = pneg %p111
        $region50: #{tpu_custom_call.1} parent=47 // pred_check_branch
          %1138 = sbr.rel (%p1136) target = $region52
        $region51: #{tpu_custom_call.1} parent=47 // pred_region
          %s1139 = sand.u32 %s96, 1
          %s1140 = scalar_lea.sflag [#allocation4], %s1139
          %s1141 = sand.u32 %s96, 1
          %s1142 = smul.addr %s1141, 768
          %s1143 = scalar_lea.vmem [#allocation7], %s1142
          %1144 = dma.done %s1140, 12288
        $region52: #{tpu_custom_call.1} parent=47 // pred_fallthru
          _
      $region48: #{tpu_custom_call.1} parent=5 // pred_fallthru
        _
    $region6: #{tpu_custom_call.1} parent=1 // loop_footer
      %s18 = sadd.s32 1, %s14
    $region7: #{tpu_custom_call.1} parent=1 // loop_footer_branch
      %13 = sbr.rel target = $region3
    $region8: #{tpu_custom_call.1} parent=1 // loop_exit
      _
    %1145 = vsyncpa [#allocation3], 1
    %s1146 = scalar_lea.sflag [#allocation3], 1
    %1147 = vsyncpa %s1146, 1
    %1148 = vsyncpa [#allocation6], 1
    %1149 = vsyncpa [#allocation4], 1
    %s1150 = scalar_lea.sflag [#allocation4], 1
    %1151 = vsyncpa %s1150, 1

</llo_original>
